<compile_context>
chip_gen: v5e
topology: v5e:2x2
jax: 0.10.0
libtpu: 0.0.40
codegen_flags: <defaults>
</compile_context>

<pallas_src>
import jax
import jax.numpy as jnp
from jax.experimental import pallas as pl
from jax.experimental.pallas import tpu as pltpu

INPUT_SIZE = 784
H1, H2, H3 = 50, 30, 20
OUTPUT_SIZE = 10
LANE = 128  # TPU lane width; every layer width is padded to this.


def _sigmoid(x):
    # sigmoid(x) == 0.5 * tanh(x / 2) + 0.5 : one EUP op per element.
    return 0.5 * jnp.tanh(0.5 * x) + 0.5


def mlp_kernel(x_ref,
               w1_ref, b1_ref,
               w2_ref, b2_ref,
               w3_ref, b3_ref,
               w4_ref, b4_ref,
               o_ref):
    # Fused 4-layer MLP on one batch tile: 4 MXU matmuls + 3 EUP tanh's.
    x = x_ref[...]
    h = _sigmoid(jnp.dot(x, w1_ref[...], preferred_element_type=jnp.float32)
                 + b1_ref[...])
    h = _sigmoid(jnp.dot(h, w2_ref[...], preferred_element_type=jnp.float32)
                 + b2_ref[...])
    h = _sigmoid(jnp.dot(h, w3_ref[...], preferred_element_type=jnp.float32)
                 + b3_ref[...])
    out = jnp.dot(h, w4_ref[...], preferred_element_type=jnp.float32) + b4_ref[...]
    o_ref[...] = out.astype(o_ref.dtype)


def _pad2(a, rows, cols):
    r, c = a.shape
    return jnp.pad(a, ((0, rows - r), (0, cols - c)))


def pack_params(params):
    """Zero-pad every layer width to LANE=128.

    Padded OUTPUT columns (and biases) are zero, so padded hidden lanes become
    sigmoid(0)=0.5; the corresponding extra INPUT rows of the next layer's
    weight are also zero, so those 0.5 lanes contribute nothing. Math on the
    real lanes is unchanged.
    """
    return {
        "w1": _pad2(params["w1"], INPUT_SIZE, LANE),
        "b1": _pad2(params["b1"], 1, LANE),
        "w2": _pad2(params["w2"], LANE, LANE),
        "b2": _pad2(params["b2"], 1, LANE),
        "w3": _pad2(params["w3"], LANE, LANE),
        "b3": _pad2(params["b3"], 1, LANE),
        "w4": _pad2(params["w4"], LANE, LANE),
        "b4": _pad2(params["b4"], 1, LANE),
    }


def _choose_batch_tile(B):
    # 512-2048 row tiles sit at >=85% of the HBM roofline for mem-bound loads;
    # 1024 * 784 * 4 B double-buffered is ~6.4 MiB -> fits every chip's VMEM.
    if B >= 2048:
        return 1024
    return min(1024, ((B + 7) // 8) * 8)  # keep sublane (8) alignment


def mlp_forward(x, packed, *, batch_tile=None):
    """x: (B, 784) float32. packed: lane-padded params from pack_params()."""
    B, F = x.shape
    assert F == INPUT_SIZE
    if batch_tile is None:
        batch_tile = _choose_batch_tile(B)

    n_tiles = pl.cdiv(B, batch_tile)
    B_pad = n_tiles * batch_tile
    if B_pad != B:
        x = jnp.pad(x, ((0, B_pad - B), (0, 0)))

    def resident_spec(arr):
        # Constant block index -> parameter stays resident in VMEM across grid.
        nd = arr.ndim
        return pl.BlockSpec(arr.shape, lambda i: (0,) * nd)

    in_specs = [
        pl.BlockSpec((batch_tile, INPUT_SIZE), lambda i: (i, 0)),
        resident_spec(packed["w1"]), resident_spec(packed["b1"]),
        resident_spec(packed["w2"]), resident_spec(packed["b2"]),
        resident_spec(packed["w3"]), resident_spec(packed["b3"]),
        resident_spec(packed["w4"]), resident_spec(packed["b4"]),
    ]
    # Lane-dense 128-wide output slab -> unmasked vst; real logits are the
    # first OUTPUT_SIZE columns, sliced off below.
    out_spec = pl.BlockSpec((batch_tile, LANE), lambda i: (i, 0))

    param_bytes = sum(int(v.size) * 4 for v in packed.values())
    cost = pl.CostEstimate(
        flops=2 * B_pad * (INPUT_SIZE * LANE + 3 * LANE * LANE),
        transcendentals=3 * B_pad * LANE,
        bytes_accessed=B_pad * INPUT_SIZE * 4 + B_pad * LANE * 4 + param_bytes,
    )

    out = pl.pallas_call(
        mlp_kernel,
        out_shape=jax.ShapeDtypeStruct((B_pad, LANE), jnp.float32),
        grid_spec=pltpu.PrefetchScalarGridSpec(
            num_scalar_prefetch=0,
            grid=(n_tiles,),
            in_specs=in_specs,
            out_specs=out_spec,
        ),
        compiler_params=pltpu.CompilerParams(
            dimension_semantics=("parallel",),
            vmem_limit_bytes=40 * 1024 * 1024,
        ),
        cost_estimate=cost,
    )(x,
      packed["w1"], packed["b1"],
      packed["w2"], packed["b2"],
      packed["w3"], packed["b3"],
      packed["w4"], packed["b4"])

    return out[:B, :OUTPUT_SIZE]


def init_params(key):
    """Deterministic init mimicking torch.nn.Linear default:
    U(-1/sqrt(fan_in), 1/sqrt(fan_in)) for both weight and bias."""
    dims = [(INPUT_SIZE, H1), (H1, H2), (H2, H3), (H3, OUTPUT_SIZE)]
    params = {}
    for li, (fan_in, fan_out) in enumerate(dims, start=1):
        key, kw, kb = jax.random.split(key, 3)
        bound = 1.0 / jnp.sqrt(jnp.float32(fan_in))
        params[f"w{li}"] = jax.random.uniform(
            kw, (fan_in, fan_out), jnp.float32, -bound, bound)
        params[f"b{li}"] = jax.random.uniform(
            kb, (1, fan_out), jnp.float32, -bound, bound)
    return params


def reference_forward(x, params):
    h = jax.nn.sigmoid(x @ params["w1"] + params["b1"])
    h = jax.nn.sigmoid(h @ params["w2"] + params["b2"])
    h = jax.nn.sigmoid(h @ params["w3"] + params["b3"])
    return h @ params["w4"] + params["b4"]


if __name__ == "__main__":
    key = jax.random.PRNGKey(0)
    key, kx1, kx2 = jax.random.split(key, 3)
    params = init_params(key)
    packed = pack_params(params)

    # Small-shape check (per module spec: batch=8, features=784).
    x_small = jax.random.normal(kx1, (8, INPUT_SIZE), jnp.float32)
    out_small = jax.block_until_ready(mlp_forward(x_small, packed))
    ref_small = reference_forward(x_small, params)
    assert out_small.shape == (8, OUTPUT_SIZE)
    assert jnp.allclose(out_small, ref_small, atol=2e-5, rtol=2e-5), "small mismatch"

    # Multi-tile check: exercises batch padding + pipelined grid (>1 steps).
    x_big = jax.random.normal(kx2, (2500, INPUT_SIZE), jnp.float32)
    out_big = jax.block_until_ready(mlp_forward(x_big, packed))
    ref_big = reference_forward(x_big, params)
    assert out_big.shape == (2500, OUTPUT_SIZE)
    assert jnp.allclose(out_big, ref_big, atol=2e-5, rtol=2e-5), "big mismatch"

    print("KERNEL_OK")
</pallas_src>

<mosaic_0001>
module attributes {stable_mosaic.version = 11 : i64} {
  func.func @mlp_kernel(%arg0: i32, %arg1: memref<8x784xf32, #tpu.memory_space<vmem>>, %arg2: memref<784x128xf32, #tpu.memory_space<vmem>>, %arg3: memref<1x128xf32, #tpu.memory_space<vmem>>, %arg4: memref<128x128xf32, #tpu.memory_space<vmem>>, %arg5: memref<1x128xf32, #tpu.memory_space<vmem>>, %arg6: memref<128x128xf32, #tpu.memory_space<vmem>>, %arg7: memref<1x128xf32, #tpu.memory_space<vmem>>, %arg8: memref<128x128xf32, #tpu.memory_space<vmem>>, %arg9: memref<1x128xf32, #tpu.memory_space<vmem>>, %arg10: memref<8x128xf32, #tpu.memory_space<vmem>>) attributes {dimension_semantics = [#tpu.dimension_semantics<parallel>], iteration_bounds = array<i64: 1>, scalar_prefetch = 0 : i64, scratch_operands = 0 : i64, tpu.core_type = #tpu.core_type<tc>, window_params = [{transform_indices = @transform_0, window_bounds = array<i64: 8, 784>}, {pipeline_mode = #tpu.pipeline_mode<synchronous>, transform_indices = @transform_1, window_bounds = array<i64: 784, 128>}, {pipeline_mode = #tpu.pipeline_mode<synchronous>, transform_indices = @transform_2, window_bounds = array<i64: 1, 128>}, {pipeline_mode = #tpu.pipeline_mode<synchronous>, transform_indices = @transform_3, window_bounds = array<i64: 128, 128>}, {pipeline_mode = #tpu.pipeline_mode<synchronous>, transform_indices = @transform_4, window_bounds = array<i64: 1, 128>}, {pipeline_mode = #tpu.pipeline_mode<synchronous>, transform_indices = @transform_5, window_bounds = array<i64: 128, 128>}, {pipeline_mode = #tpu.pipeline_mode<synchronous>, transform_indices = @transform_6, window_bounds = array<i64: 1, 128>}, {pipeline_mode = #tpu.pipeline_mode<synchronous>, transform_indices = @transform_7, window_bounds = array<i64: 128, 128>}, {pipeline_mode = #tpu.pipeline_mode<synchronous>, transform_indices = @transform_8, window_bounds = array<i64: 1, 128>}, {transform_indices = @transform_9, window_bounds = array<i64: 8, 128>}]} {
    %c0 = arith.constant 0 : index
    %c0_0 = arith.constant 0 : index
    %0 = vector.load %arg1[%c0, %c0_0] : memref<8x784xf32, #tpu.memory_space<vmem>>, vector<8x784xf32>
    %c0_1 = arith.constant 0 : index
    %c0_2 = arith.constant 0 : index
    %1 = vector.load %arg2[%c0_1, %c0_2] : memref<784x128xf32, #tpu.memory_space<vmem>>, vector<784x128xf32>
    %cst = arith.constant dense<0.000000e+00> : vector<8x128xf32>
    %2 = tpu.matmul %0, %1, %cst {dimension_numbers = #tpu.dot_dimension_numbers<[1], [0], [0], [1], [0, 0, 1, 1], [], []>} : vector<8x784xf32>, vector<784x128xf32>, vector<8x128xf32> -> vector<8x128xf32>
    %c0_3 = arith.constant 0 : index
    %c0_4 = arith.constant 0 : index
    %3 = vector.load %arg3[%c0_3, %c0_4] : memref<1x128xf32, #tpu.memory_space<vmem>>, vector<1x128xf32>
    %4 = vector.broadcast %3 : vector<1x128xf32> to vector<8x128xf32>
    %5 = arith.addf %2, %4 : vector<8x128xf32>
    %cst_5 = arith.constant 5.000000e-01 : f32
    %6 = vector.broadcast %cst_5 : f32 to vector<8x128xf32>
    %7 = arith.mulf %6, %5 : vector<8x128xf32>
    %8 = math.tanh %7 : vector<8x128xf32>
    %cst_6 = arith.constant 5.000000e-01 : f32
    %9 = vector.broadcast %cst_6 : f32 to vector<8x128xf32>
    %10 = arith.mulf %9, %8 : vector<8x128xf32>
    %cst_7 = arith.constant 5.000000e-01 : f32
    %11 = vector.broadcast %cst_7 : f32 to vector<8x128xf32>
    %12 = arith.addf %10, %11 : vector<8x128xf32>
    %c0_8 = arith.constant 0 : index
    %c0_9 = arith.constant 0 : index
    %13 = vector.load %arg4[%c0_8, %c0_9] : memref<128x128xf32, #tpu.memory_space<vmem>>, vector<128x128xf32>
    %cst_10 = arith.constant dense<0.000000e+00> : vector<8x128xf32>
    %14 = tpu.matmul %12, %13, %cst_10 {dimension_numbers = #tpu.dot_dimension_numbers<[1], [0], [0], [1], [0, 0, 1, 1], [], []>} : vector<8x128xf32>, vector<128x128xf32>, vector<8x128xf32> -> vector<8x128xf32>
    %c0_11 = arith.constant 0 : index
    %c0_12 = arith.constant 0 : index
    %15 = vector.load %arg5[%c0_11, %c0_12] : memref<1x128xf32, #tpu.memory_space<vmem>>, vector<1x128xf32>
    %16 = vector.broadcast %15 : vector<1x128xf32> to vector<8x128xf32>
    %17 = arith.addf %14, %16 : vector<8x128xf32>
    %cst_13 = arith.constant 5.000000e-01 : f32
    %18 = vector.broadcast %cst_13 : f32 to vector<8x128xf32>
    %19 = arith.mulf %18, %17 : vector<8x128xf32>
    %20 = math.tanh %19 : vector<8x128xf32>
    %cst_14 = arith.constant 5.000000e-01 : f32
    %21 = vector.broadcast %cst_14 : f32 to vector<8x128xf32>
    %22 = arith.mulf %21, %20 : vector<8x128xf32>
    %cst_15 = arith.constant 5.000000e-01 : f32
    %23 = vector.broadcast %cst_15 : f32 to vector<8x128xf32>
    %24 = arith.addf %22, %23 : vector<8x128xf32>
    %c0_16 = arith.constant 0 : index
    %c0_17 = arith.constant 0 : index
    %25 = vector.load %arg6[%c0_16, %c0_17] : memref<128x128xf32, #tpu.memory_space<vmem>>, vector<128x128xf32>
    %cst_18 = arith.constant dense<0.000000e+00> : vector<8x128xf32>
    %26 = tpu.matmul %24, %25, %cst_18 {dimension_numbers = #tpu.dot_dimension_numbers<[1], [0], [0], [1], [0, 0, 1, 1], [], []>} : vector<8x128xf32>, vector<128x128xf32>, vector<8x128xf32> -> vector<8x128xf32>
    %c0_19 = arith.constant 0 : index
    %c0_20 = arith.constant 0 : index
    %27 = vector.load %arg7[%c0_19, %c0_20] : memref<1x128xf32, #tpu.memory_space<vmem>>, vector<1x128xf32>
    %28 = vector.broadcast %27 : vector<1x128xf32> to vector<8x128xf32>
    %29 = arith.addf %26, %28 : vector<8x128xf32>
    %cst_21 = arith.constant 5.000000e-01 : f32
    %30 = vector.broadcast %cst_21 : f32 to vector<8x128xf32>
    %31 = arith.mulf %30, %29 : vector<8x128xf32>
    %32 = math.tanh %31 : vector<8x128xf32>
    %cst_22 = arith.constant 5.000000e-01 : f32
    %33 = vector.broadcast %cst_22 : f32 to vector<8x128xf32>
    %34 = arith.mulf %33, %32 : vector<8x128xf32>
    %cst_23 = arith.constant 5.000000e-01 : f32
    %35 = vector.broadcast %cst_23 : f32 to vector<8x128xf32>
    %36 = arith.addf %34, %35 : vector<8x128xf32>
    %c0_24 = arith.constant 0 : index
    %c0_25 = arith.constant 0 : index
    %37 = vector.load %arg8[%c0_24, %c0_25] : memref<128x128xf32, #tpu.memory_space<vmem>>, vector<128x128xf32>
    %cst_26 = arith.constant dense<0.000000e+00> : vector<8x128xf32>
    %38 = tpu.matmul %36, %37, %cst_26 {dimension_numbers = #tpu.dot_dimension_numbers<[1], [0], [0], [1], [0, 0, 1, 1], [], []>} : vector<8x128xf32>, vector<128x128xf32>, vector<8x128xf32> -> vector<8x128xf32>
    %c0_27 = arith.constant 0 : index
    %c0_28 = arith.constant 0 : index
    %39 = vector.load %arg9[%c0_27, %c0_28] : memref<1x128xf32, #tpu.memory_space<vmem>>, vector<1x128xf32>
    %40 = vector.broadcast %39 : vector<1x128xf32> to vector<8x128xf32>
    %41 = arith.addf %38, %40 : vector<8x128xf32>
    %c0_29 = arith.constant 0 : index
    %c0_30 = arith.constant 0 : index
    %42 = vector.load %arg10[%c0_29, %c0_30] : memref<8x128xf32, #tpu.memory_space<vmem>>, vector<8x128xf32>
    tpu.vector_store %arg10[%c0_29, %c0_30], %41 {strides = array<i32>} : memref<8x128xf32, #tpu.memory_space<vmem>>, vector<8x128xf32>,
    return
  }
  func.func @transform_0(%arg0: i32) -> (i32, i32) {
    %c0_i32 = arith.constant 0 : i32
    %c0_i32_0 = arith.constant 0 : i32
    return %arg0, %c0_i32 : i32, i32
  }
  func.func @transform_1(%arg0: i32) -> (i32, i32) {
    %c0_i32 = arith.constant 0 : i32
    %c0_i32_0 = arith.constant 0 : i32
    %c0_i32_1 = arith.constant 0 : i32
    return %c0_i32, %c0_i32_0 : i32, i32
  }
  func.func @transform_2(%arg0: i32) -> (i32, i32) {
    %c0_i32 = arith.constant 0 : i32
    %c0_i32_0 = arith.constant 0 : i32
    %c0_i32_1 = arith.constant 0 : i32
    return %c0_i32, %c0_i32_0 : i32, i32
  }
  func.func @transform_3(%arg0: i32) -> (i32, i32) {
    %c0_i32 = arith.constant 0 : i32
    %c0_i32_0 = arith.constant 0 : i32
    %c0_i32_1 = arith.constant 0 : i32
    return %c0_i32, %c0_i32_0 : i32, i32
  }
  func.func @transform_4(%arg0: i32) -> (i32, i32) {
    %c0_i32 = arith.constant 0 : i32
    %c0_i32_0 = arith.constant 0 : i32
    %c0_i32_1 = arith.constant 0 : i32
    return %c0_i32, %c0_i32_0 : i32, i32
  }
  func.func @transform_5(%arg0: i32) -> (i32, i32) {
    %c0_i32 = arith.constant 0 : i32
    %c0_i32_0 = arith.constant 0 : i32
    %c0_i32_1 = arith.constant 0 : i32
    return %c0_i32, %c0_i32_0 : i32, i32
  }
  func.func @transform_6(%arg0: i32) -> (i32, i32) {
    %c0_i32 = arith.constant 0 : i32
    %c0_i32_0 = arith.constant 0 : i32
    %c0_i32_1 = arith.constant 0 : i32
    return %c0_i32, %c0_i32_0 : i32, i32
  }
  func.func @transform_7(%arg0: i32) -> (i32, i32) {
    %c0_i32 = arith.constant 0 : i32
    %c0_i32_0 = arith.constant 0 : i32
    %c0_i32_1 = arith.constant 0 : i32
    return %c0_i32, %c0_i32_0 : i32, i32
  }
  func.func @transform_8(%arg0: i32) -> (i32, i32) {
    %c0_i32 = arith.constant 0 : i32
    %c0_i32_0 = arith.constant 0 : i32
    %c0_i32_1 = arith.constant 0 : i32
    return %c0_i32, %c0_i32_0 : i32, i32
  }
  func.func @transform_9(%arg0: i32) -> (i32, i32) {
    %c0_i32 = arith.constant 0 : i32
    %c0_i32_0 = arith.constant 0 : i32
    return %arg0, %c0_i32 : i32, i32
  }
}

</mosaic_0001>

<llo_original>
// kernel: tpu_custom_call.1
$region0: #{tpu_custom_call.1}
  #allocation0 [shape = 'u32[]', space=smem, size = 0x4, offset = 0x4, fixed_abs, tag = 'smem constant byte address 0x4 - core index']
  #allocation1 [shape = 'u32[72,128]{1,0:T(1,128)}', space=vmem, size = 0x9000, scoped, tag = 'internal scratch']
  %s0 = inlined_call_operand.hbm [shape: f32[8,784], index: 0, kind: input, shape index: {}]
  %s1 = inlined_call_operand.hbm [shape: f32[784,128], index: 1, kind: input, shape index: {}]
  %s2 = inlined_call_operand.vmem [shape: f32[1,128], index: 2, kind: input, shape index: {}]
  %s3 = inlined_call_operand.hbm [shape: f32[128,128], index: 3, kind: input, shape index: {}]
  %s4 = inlined_call_operand.vmem [shape: f32[1,128], index: 4, kind: input, shape index: {}]
  %s5 = inlined_call_operand.hbm [shape: f32[128,128], index: 5, kind: input, shape index: {}]
  %s6 = inlined_call_operand.vmem [shape: f32[1,128], index: 6, kind: input, shape index: {}]
  %s7 = inlined_call_operand.hbm [shape: f32[128,128], index: 7, kind: input, shape index: {}]
  %s8 = inlined_call_operand.vmem [shape: f32[1,128], index: 8, kind: input, shape index: {}]
  %s9 = inlined_call_operand.hbm [shape: f32[8,128], index: 9, kind: output, shape index: {}]
  %s10 = sld [smem:[#allocation0]]
  $region66: #{tpu_custom_call.1} parent=0
    _
  %s12 = ssub.s32 1, %s10
  %s13 = scalar_select 0, %s12, %s10
  $region1: #{tpu_custom_call.1} parent=0
    #allocation2 [shape = 'u8[28672]{0}', space=vmem, size = 0x7000, scoped, tag = 'input window, operand 0, single buffered']
    #allocation3 [shape = 's32[1]{0}', space=sflag, size = 0x4, scoped, tag = 'scoped memory for tpu_custom_call.1']
    #allocation4 [shape = 's32[1]{0}', space=sflag, size = 0x4, scoped, tag = 'scoped memory for tpu_custom_call.1']
    #allocation5 [shape = 'u8[401408]{0}', space=vmem, size = 0x62000, scoped, tag = 'input window, operand 1, single buffered']
    #allocation6 [shape = 's32[1]{0}', space=sflag, size = 0x4, scoped, tag = 'scoped memory for tpu_custom_call.1']
    #allocation7 [shape = 'u8[65536]{0}', space=vmem, size = 0x10000, scoped, tag = 'input window, operand 3, single buffered']
    #allocation8 [shape = 'u8[65536]{0}', space=vmem, size = 0x10000, scoped, tag = 'input window, operand 5, single buffered']
    #allocation9 [shape = 's32[1]{0}', space=sflag, size = 0x4, scoped, tag = 'scoped memory for tpu_custom_call.1']
    #allocation10 [shape = 'u8[65536]{0}', space=vmem, size = 0x10000, scoped, tag = 'input window, operand 7, single buffered']
    #allocation11 [shape = 'u8[4096]{0}', space=vmem, size = 0x1000, scoped, tag = 'output window, operand 0, single buffered']
    %14 = vsyncpa [#allocation3], 0
    %15 = vsyncpa [#allocation6], 0
    %16 = vsyncpa [#allocation9], 0
    %17 = vsyncpa [#allocation4], 0
    // Predicated region
    $region2: #{tpu_custom_call.1} parent=1 // pred_check
      _
    $region3: #{tpu_custom_call.1} parent=1 // pred_check_branch
      %19 = sbr.rel (0) target = $region5
    $region4: #{tpu_custom_call.1} parent=1 // pred_region
      %21 = vsyncadd [#allocation3], 0
      %s23 = sshll.u32 %s0, 4
      %s24 = int_to_ptr.hbm [resolvable:$true] %s23
      %s25 = sshll.u32 [#allocation2], 4
      %s26 = int_to_ptr.vmem [resolvable:$true] %s25
      %28 = dma.hbm_to_vmem [thread:$0]  %s24, 896, %s26, [#allocation3]
    $region5: #{tpu_custom_call.1} parent=1 // pred_fallthru
      _
    // Predicated region
    $region6: #{tpu_custom_call.1} parent=1 // pred_check
      _
    $region7: #{tpu_custom_call.1} parent=1 // pred_check_branch
      %30 = sbr.rel (0) target = $region9
    $region8: #{tpu_custom_call.1} parent=1 // pred_region
      %32 = vsyncadd [#allocation6], 0
      %s33 = sshll.u32 %s1, 4
      %s34 = int_to_ptr.hbm [resolvable:$true] %s33
      %s35 = sshll.u32 [#allocation5], 4
      %s36 = int_to_ptr.vmem [resolvable:$true] %s35
      %41 = dma.hbm_to_vmem [thread:$0]  %s34, 12544, %s36, [#allocation6], 128, 128, 8
    $region9: #{tpu_custom_call.1} parent=1 // pred_fallthru
      _
    // Predicated region
    $region10: #{tpu_custom_call.1} parent=1 // pred_check
      _
    $region11: #{tpu_custom_call.1} parent=1 // pred_check_branch
      %43 = sbr.rel (0) target = $region13
    $region12: #{tpu_custom_call.1} parent=1 // pred_region
      _
    $region13: #{tpu_custom_call.1} parent=1 // pred_fallthru
      _
    // Predicated region
    $region14: #{tpu_custom_call.1} parent=1 // pred_check
      _
    $region15: #{tpu_custom_call.1} parent=1 // pred_check_branch
      %45 = sbr.rel (0) target = $region17
    $region16: #{tpu_custom_call.1} parent=1 // pred_region
      %47 = vsyncadd [#allocation6], 0
      %s48 = sshll.u32 %s3, 4
      %s49 = int_to_ptr.hbm [resolvable:$true] %s48
      %s50 = sshll.u32 [#allocation7], 4
      %s51 = int_to_ptr.vmem [resolvable:$true] %s50
      %56 = dma.hbm_to_vmem [thread:$0]  %s49, 2048, %s51, [#allocation6], 128, 128, 8
    $region17: #{tpu_custom_call.1} parent=1 // pred_fallthru
      _
    // Predicated region
    $region18: #{tpu_custom_call.1} parent=1 // pred_check
      _
    $region19: #{tpu_custom_call.1} parent=1 // pred_check_branch
      %58 = sbr.rel (0) target = $region21
    $region20: #{tpu_custom_call.1} parent=1 // pred_region
      _
    $region21: #{tpu_custom_call.1} parent=1 // pred_fallthru
      _
    // Predicated region
    $region22: #{tpu_custom_call.1} parent=1 // pred_check
      _
    $region23: #{tpu_custom_call.1} parent=1 // pred_check_branch
      %60 = sbr.rel (0) target = $region25
    $region24: #{tpu_custom_call.1} parent=1 // pred_region
      %62 = vsyncadd [#allocation9], 0
      %s63 = sshll.u32 %s5, 4
      %s64 = int_to_ptr.hbm [resolvable:$true] %s63
      %s65 = sshll.u32 [#allocation8], 4
      %s66 = int_to_ptr.vmem [resolvable:$true] %s65
      %71 = dma.hbm_to_vmem [thread:$0]  %s64, 2048, %s66, [#allocation9], 128, 128, 8
    $region25: #{tpu_custom_call.1} parent=1 // pred_fallthru
      _
    // Predicated region
    $region26: #{tpu_custom_call.1} parent=1 // pred_check
      _
    $region27: #{tpu_custom_call.1} parent=1 // pred_check_branch
      %73 = sbr.rel (0) target = $region29
    $region28: #{tpu_custom_call.1} parent=1 // pred_region
      _
    $region29: #{tpu_custom_call.1} parent=1 // pred_fallthru
      _
    // Predicated region
    $region30: #{tpu_custom_call.1} parent=1 // pred_check
      _
    $region31: #{tpu_custom_call.1} parent=1 // pred_check_branch
      %75 = sbr.rel (0) target = $region33
    $region32: #{tpu_custom_call.1} parent=1 // pred_region
      %77 = vsyncadd [#allocation9], 0
      %s78 = sshll.u32 %s7, 4
      %s79 = int_to_ptr.hbm [resolvable:$true] %s78
      %s80 = sshll.u32 [#allocation10], 4
      %s81 = int_to_ptr.vmem [resolvable:$true] %s80
      %86 = dma.hbm_to_vmem [thread:$0]  %s79, 2048, %s81, [#allocation9], 128, 128, 8
    $region33: #{tpu_custom_call.1} parent=1 // pred_fallthru
      _
    // Predicated region
    $region34: #{tpu_custom_call.1} parent=1 // pred_check
      _
    $region35: #{tpu_custom_call.1} parent=1 // pred_check_branch
      %88 = sbr.rel (0) target = $region37
    $region36: #{tpu_custom_call.1} parent=1 // pred_region
      _
    $region37: #{tpu_custom_call.1} parent=1 // pred_fallthru
      _
    // Predicated region
    $region38: #{tpu_custom_call.1} parent=1 // pred_check
      _
    $region39: #{tpu_custom_call.1} parent=1 // pred_check_branch
      %90 = sbr.rel (0) target = $region41
    $region40: #{tpu_custom_call.1} parent=1 // pred_region
      %92 = dma.done [#allocation3], 896
    $region41: #{tpu_custom_call.1} parent=1 // pred_fallthru
      _
    // Predicated region
    $region42: #{tpu_custom_call.1} parent=1 // pred_check
      _
    $region43: #{tpu_custom_call.1} parent=1 // pred_check_branch
      %94 = sbr.rel (0) target = $region45
    $region44: #{tpu_custom_call.1} parent=1 // pred_region
      %96 = dma.done [#allocation6], 12544
    $region45: #{tpu_custom_call.1} parent=1 // pred_fallthru
      _
    // Predicated region
    $region46: #{tpu_custom_call.1} parent=1 // pred_check
      _
    $region47: #{tpu_custom_call.1} parent=1 // pred_check_branch
      %98 = sbr.rel (0) target = $region49
    $region48: #{tpu_custom_call.1} parent=1 // pred_region
      %100 = dma.done [#allocation6], 2048
    $region49: #{tpu_custom_call.1} parent=1 // pred_fallthru
      _
    // Predicated region
    $region50: #{tpu_custom_call.1} parent=1 // pred_check
      _
    $region51: #{tpu_custom_call.1} parent=1 // pred_check_branch
      %102 = sbr.rel (0) target = $region53
    $region52: #{tpu_custom_call.1} parent=1 // pred_region
      %104 = dma.done [#allocation9], 2048
    $region53: #{tpu_custom_call.1} parent=1 // pred_fallthru
      _
    // Predicated region
    $region54: #{tpu_custom_call.1} parent=1 // pred_check
      _
    $region55: #{tpu_custom_call.1} parent=1 // pred_check_branch
      %106 = sbr.rel (0) target = $region57
    $region56: #{tpu_custom_call.1} parent=1 // pred_region
      %108 = dma.done [#allocation9], 2048
    $region57: #{tpu_custom_call.1} parent=1 // pred_fallthru
      _
    %v109 = vld [vmem:[#allocation2] sm:$0xff]
    %v110 = vld [vmem:[#allocation2 + $0x8] sm:$0xff]
    %v111 = vld [vmem:[#allocation2 + $0x10] sm:$0xff]
    %v112 = vld [vmem:[#allocation2 + $0x18] sm:$0xff]
    %v113 = vld [vmem:[#allocation2 + $0x20] sm:$0xff]
    %v114 = vld [vmem:[#allocation2 + $0x28] sm:$0xff]
    %v115 = vld [vmem:[#allocation2 + $0x30] sm:$0xff]
    %v116 = vld [vmem:[#allocation5] sm:$0xff]
    %v117 = vld [vmem:[#allocation5 + $0x8] sm:$0xff]
    %v118 = vld [vmem:[#allocation5 + $0x10] sm:$0xff]
    %v119 = vld [vmem:[#allocation5 + $0x18] sm:$0xff]
    %v120 = vld [vmem:[#allocation5 + $0x20] sm:$0xff]
    %v121 = vld [vmem:[#allocation5 + $0x28] sm:$0xff]
    %v122 = vld [vmem:[#allocation5 + $0x30] sm:$0xff]
    %v123 = vld [vmem:[#allocation5 + $0x38] sm:$0xff]
    %v124 = vld [vmem:[#allocation5 + $0x40] sm:$0xff]
    %v125 = vld [vmem:[#allocation5 + $0x48] sm:$0xff]
    %v126 = vld [vmem:[#allocation5 + $0x50] sm:$0xff]
    %v127 = vld [vmem:[#allocation5 + $0x58] sm:$0xff]
    %v128 = vld [vmem:[#allocation5 + $0x60] sm:$0xff]
    %v129 = vld [vmem:[#allocation5 + $0x68] sm:$0xff]
    %v130 = vld [vmem:[#allocation5 + $0x70] sm:$0xff]
    %v131 = vld [vmem:[#allocation5 + $0x78] sm:$0xff]
    %v132 = vld [vmem:[#allocation5 + $0x80] sm:$0xff]
    %v133 = vld [vmem:[#allocation5 + $0x88] sm:$0xff]
    %v134 = vld [vmem:[#allocation5 + $0x90] sm:$0xff]
    %v135 = vld [vmem:[#allocation5 + $0x98] sm:$0xff]
    %v136 = vld [vmem:[#allocation5 + $0xa0] sm:$0xff]
    %v137 = vld [vmem:[#allocation5 + $0xa8] sm:$0xff]
    %v138 = vld [vmem:[#allocation5 + $0xb0] sm:$0xff]
    %v139 = vld [vmem:[#allocation5 + $0xb8] sm:$0xff]
    %v140 = vld [vmem:[#allocation5 + $0xc0] sm:$0xff]
    %v141 = vld [vmem:[#allocation5 + $0xc8] sm:$0xff]
    %v142 = vld [vmem:[#allocation5 + $0xd0] sm:$0xff]
    %v143 = vld [vmem:[#allocation5 + $0xd8] sm:$0xff]
    %v144 = vld [vmem:[#allocation5 + $0xe0] sm:$0xff]
    %v145 = vld [vmem:[#allocation5 + $0xe8] sm:$0xff]
    %v146 = vld [vmem:[#allocation5 + $0xf0] sm:$0xff]
    %v147 = vld [vmem:[#allocation5 + $0xf8] sm:$0xff]
    %v148 = vld [vmem:[#allocation5 + $0x100] sm:$0xff]
    %v149 = vld [vmem:[#allocation5 + $0x108] sm:$0xff]
    %v150 = vld [vmem:[#allocation5 + $0x110] sm:$0xff]
    %v151 = vld [vmem:[#allocation5 + $0x118] sm:$0xff]
    %v152 = vld [vmem:[#allocation5 + $0x120] sm:$0xff]
    %v153 = vld [vmem:[#allocation5 + $0x128] sm:$0xff]
    %v154 = vld [vmem:[#allocation5 + $0x130] sm:$0xff]
    %v155 = vld [vmem:[#allocation5 + $0x138] sm:$0xff]
    %v156 = vld [vmem:[#allocation5 + $0x140] sm:$0xff]
    %v157 = vld [vmem:[#allocation5 + $0x148] sm:$0xff]
    %v158 = vld [vmem:[#allocation5 + $0x150] sm:$0xff]
    %v159 = vld [vmem:[#allocation5 + $0x158] sm:$0xff]
    %v160 = vld [vmem:[#allocation5 + $0x160] sm:$0xff]
    %v161 = vld [vmem:[#allocation5 + $0x168] sm:$0xff]
    %v162 = vld [vmem:[#allocation5 + $0x170] sm:$0xff]
    %v163 = vld [vmem:[#allocation5 + $0x178] sm:$0xff]
    %v164 = vld [vmem:[#allocation5 + $0x180] sm:$0xff]
    %v165 = vld [vmem:[#allocation5 + $0x188] sm:$0xff]
    %v166 = vld [vmem:[#allocation5 + $0x190] sm:$0xff]
    %v167 = vld [vmem:[#allocation5 + $0x198] sm:$0xff]
    %v168 = vld [vmem:[#allocation5 + $0x1a0] sm:$0xff]
    %v169 = vld [vmem:[#allocation5 + $0x1a8] sm:$0xff]
    %v170 = vld [vmem:[#allocation5 + $0x1b0] sm:$0xff]
    %v171 = vld [vmem:[#allocation5 + $0x1b8] sm:$0xff]
    %v172 = vld [vmem:[#allocation5 + $0x1c0] sm:$0xff]
    %v173 = vld [vmem:[#allocation5 + $0x1c8] sm:$0xff]
    %v174 = vld [vmem:[#allocation5 + $0x1d0] sm:$0xff]
    %v175 = vld [vmem:[#allocation5 + $0x1d8] sm:$0xff]
    %v176 = vld [vmem:[#allocation5 + $0x1e0] sm:$0xff]
    %v177 = vld [vmem:[#allocation5 + $0x1e8] sm:$0xff]
    %v178 = vld [vmem:[#allocation5 + $0x1f0] sm:$0xff]
    %v179 = vld [vmem:[#allocation5 + $0x1f8] sm:$0xff]
    %v180 = vld [vmem:[#allocation5 + $0x200] sm:$0xff]
    %v181 = vld [vmem:[#allocation5 + $0x208] sm:$0xff]
    %v182 = vld [vmem:[#allocation5 + $0x210] sm:$0xff]
    %v183 = vld [vmem:[#allocation5 + $0x218] sm:$0xff]
    %v184 = vld [vmem:[#allocation5 + $0x220] sm:$0xff]
    %v185 = vld [vmem:[#allocation5 + $0x228] sm:$0xff]
    %v186 = vld [vmem:[#allocation5 + $0x230] sm:$0xff]
    %v187 = vld [vmem:[#allocation5 + $0x238] sm:$0xff]
    %v188 = vld [vmem:[#allocation5 + $0x240] sm:$0xff]
    %v189 = vld [vmem:[#allocation5 + $0x248] sm:$0xff]
    %v190 = vld [vmem:[#allocation5 + $0x250] sm:$0xff]
    %v191 = vld [vmem:[#allocation5 + $0x258] sm:$0xff]
    %v192 = vld [vmem:[#allocation5 + $0x260] sm:$0xff]
    %v193 = vld [vmem:[#allocation5 + $0x268] sm:$0xff]
    %v194 = vld [vmem:[#allocation5 + $0x270] sm:$0xff]
    %v195 = vld [vmem:[#allocation5 + $0x278] sm:$0xff]
    %v196 = vld [vmem:[#allocation5 + $0x280] sm:$0xff]
    %v197 = vld [vmem:[#allocation5 + $0x288] sm:$0xff]
    %v198 = vld [vmem:[#allocation5 + $0x290] sm:$0xff]
    %v199 = vld [vmem:[#allocation5 + $0x298] sm:$0xff]
    %v200 = vld [vmem:[#allocation5 + $0x2a0] sm:$0xff]
    %v201 = vld [vmem:[#allocation5 + $0x2a8] sm:$0xff]
    %v202 = vld [vmem:[#allocation5 + $0x2b0] sm:$0xff]
    %v203 = vld [vmem:[#allocation5 + $0x2b8] sm:$0xff]
    %v204 = vld [vmem:[#allocation5 + $0x2c0] sm:$0xff]
    %v205 = vld [vmem:[#allocation5 + $0x2c8] sm:$0xff]
    %v206 = vld [vmem:[#allocation5 + $0x2d0] sm:$0xff]
    %v207 = vld [vmem:[#allocation5 + $0x2d8] sm:$0xff]
    %v208 = vld [vmem:[#allocation5 + $0x2e0] sm:$0xff]
    %v209 = vld [vmem:[#allocation5 + $0x2e8] sm:$0xff]
    %v210 = vld [vmem:[#allocation5 + $0x2f0] sm:$0xff]
    %v211 = vld [vmem:[#allocation5 + $0x2f8] sm:$0xff]
    %v212 = vld [vmem:[#allocation5 + $0x300] sm:$0xff]
    %v213 = vld [vmem:[#allocation5 + $0x308] sm:$0xff]
    %v214 = vld [vmem:[%s2] sm:$0x1]
    %v216 = vperm.slane %v214, 0
    %vm218 = vcmask 130048
    %v220 = vsel %vm218, %v115, 0
    %222 = vmatpush.msra.mxu0 %v131
    %223 = vmatpush.msra.mxu0 %v130
    %224 = vmatpush.msra.mxu0 %v129
    %225 = vmatpush.msra.mxu0 %v128
    %226 = vmatpush.msra.mxu0 %v127
    %227 = vmatpush.msra.mxu0 %v126
    %228 = vmatpush.msra.mxu0 %v125
    %229 = vmatpush.msra.mxu0 %v124
    %230 = vmatpush.msra.mxu0 %v123
    %231 = vmatpush.msra.mxu0 %v122
    %232 = vmatpush.msra.mxu0 %v121
    %233 = vmatpush.msra.mxu0 %v120
    %234 = vmatpush.msra.mxu0 %v119
    %235 = vmatpush.msra.mxu0 %v118
    %236 = vmatpush.msra.mxu0 %v117
    %237 = vmatpush.msra.mxu0 %v116
    %238 = vmatmul.f32.gmra.mxu0 %v109
    %v239 = vpop.f32.mrf.mxu0
    %v240 = vadd.f32 %v216, %v239
    %241 = vdwg.mxu0
    %242 = vmatpush.msra.mxu0 %v147
    %243 = vmatpush.msra.mxu0 %v146
    %244 = vmatpush.msra.mxu0 %v145
    %245 = vmatpush.msra.mxu0 %v144
    %246 = vmatpush.msra.mxu0 %v143
    %247 = vmatpush.msra.mxu0 %v142
    %248 = vmatpush.msra.mxu0 %v141
    %249 = vmatpush.msra.mxu0 %v140
    %250 = vmatpush.msra.mxu0 %v139
    %251 = vmatpush.msra.mxu0 %v138
    %252 = vmatpush.msra.mxu0 %v137
    %253 = vmatpush.msra.mxu0 %v136
    %254 = vmatpush.msra.mxu0 %v135
    %255 = vmatpush.msra.mxu0 %v134
    %256 = vmatpush.msra.mxu0 %v133
    %257 = vmatpush.msra.mxu0 %v132
    %258 = vmatmul.f32.gmra.mxu0 %v110
    %v259 = vpop.f32.mrf.mxu0
    %v260 = vadd.f32 %v240, %v259
    %261 = vdwg.mxu0
    %262 = vmatpush.msra.mxu0 %v163
    %263 = vmatpush.msra.mxu0 %v162
    %264 = vmatpush.msra.mxu0 %v161
    %265 = vmatpush.msra.mxu0 %v160
    %266 = vmatpush.msra.mxu0 %v159
    %267 = vmatpush.msra.mxu0 %v158
    %268 = vmatpush.msra.mxu0 %v157
    %269 = vmatpush.msra.mxu0 %v156
    %270 = vmatpush.msra.mxu0 %v155
    %271 = vmatpush.msra.mxu0 %v154
    %272 = vmatpush.msra.mxu0 %v153
    %273 = vmatpush.msra.mxu0 %v152
    %274 = vmatpush.msra.mxu0 %v151
    %275 = vmatpush.msra.mxu0 %v150
    %276 = vmatpush.msra.mxu0 %v149
    %277 = vmatpush.msra.mxu0 %v148
    %278 = vmatmul.f32.gmra.mxu0 %v111
    %v279 = vpop.f32.mrf.mxu0
    %v280 = vadd.f32 %v260, %v279
    %281 = vdwg.mxu0
    %282 = vmatpush.msra.mxu0 %v179
    %283 = vmatpush.msra.mxu0 %v178
    %284 = vmatpush.msra.mxu0 %v177
    %285 = vmatpush.msra.mxu0 %v176
    %286 = vmatpush.msra.mxu0 %v175
    %287 = vmatpush.msra.mxu0 %v174
    %288 = vmatpush.msra.mxu0 %v173
    %289 = vmatpush.msra.mxu0 %v172
    %290 = vmatpush.msra.mxu0 %v171
    %291 = vmatpush.msra.mxu0 %v170
    %292 = vmatpush.msra.mxu0 %v169
    %293 = vmatpush.msra.mxu0 %v168
    %294 = vmatpush.msra.mxu0 %v167
    %295 = vmatpush.msra.mxu0 %v166
    %296 = vmatpush.msra.mxu0 %v165
    %297 = vmatpush.msra.mxu0 %v164
    %298 = vmatmul.f32.gmra.mxu0 %v112
    %v299 = vpop.f32.mrf.mxu0
    %v300 = vadd.f32 %v280, %v299
    %301 = vdwg.mxu0
    %302 = vmatpush.msra.mxu0 %v195
    %303 = vmatpush.msra.mxu0 %v194
    %304 = vmatpush.msra.mxu0 %v193
    %305 = vmatpush.msra.mxu0 %v192
    %306 = vmatpush.msra.mxu0 %v191
    %307 = vmatpush.msra.mxu0 %v190
    %308 = vmatpush.msra.mxu0 %v189
    %309 = vmatpush.msra.mxu0 %v188
    %310 = vmatpush.msra.mxu0 %v187
    %311 = vmatpush.msra.mxu0 %v186
    %312 = vmatpush.msra.mxu0 %v185
    %313 = vmatpush.msra.mxu0 %v184
    %314 = vmatpush.msra.mxu0 %v183
    %315 = vmatpush.msra.mxu0 %v182
    %316 = vmatpush.msra.mxu0 %v181
    %317 = vmatpush.msra.mxu0 %v180
    %318 = vmatmul.f32.gmra.mxu0 %v113
    %v319 = vpop.f32.mrf.mxu0
    %v320 = vadd.f32 %v300, %v319
    %321 = vdwg.mxu0
    %322 = vmatpush.msra.mxu0 %v211
    %323 = vmatpush.msra.mxu0 %v210
    %324 = vmatpush.msra.mxu0 %v209
    %325 = vmatpush.msra.mxu0 %v208
    %326 = vmatpush.msra.mxu0 %v207
    %327 = vmatpush.msra.mxu0 %v206
    %328 = vmatpush.msra.mxu0 %v205
    %329 = vmatpush.msra.mxu0 %v204
    %330 = vmatpush.msra.mxu0 %v203
    %331 = vmatpush.msra.mxu0 %v202
    %332 = vmatpush.msra.mxu0 %v201
    %333 = vmatpush.msra.mxu0 %v200
    %334 = vmatpush.msra.mxu0 %v199
    %335 = vmatpush.msra.mxu0 %v198
    %336 = vmatpush.msra.mxu0 %v197
    %337 = vmatpush.msra.mxu0 %v196
    %338 = vmatmul.f32.gmra.mxu0 %v114
    %v339 = vpop.f32.mrf.mxu0
    %v340 = vadd.f32 %v320, %v339
    %341 = vdwg.mxu0
    %342 = vmatpush.msra.mxu0 0.0
    %343 = vmatpush.msra.mxu0 0.0
    %344 = vmatpush.msra.mxu0 0.0
    %345 = vmatpush.msra.mxu0 0.0
    %346 = vmatpush.msra.mxu0 0.0
    %347 = vmatpush.msra.mxu0 0.0
    %348 = vmatpush.msra.mxu0 0.0
    %349 = vmatpush.msra.mxu0 0.0
    %350 = vmatpush.msra.mxu0 0.0
    %351 = vmatpush.msra.mxu0 0.0
    %352 = vmatpush.msra.mxu0 0.0
    %353 = vmatpush.msra.mxu0 0.0
    %354 = vmatpush.msra.mxu0 0.0
    %355 = vmatpush.msra.mxu0 0.0
    %356 = vmatpush.msra.mxu0 %v213
    %357 = vmatpush.msra.mxu0 %v212
    %358 = vmatmul.f32.gmra.mxu0 %v220
    %v359 = vpop.f32.mrf.mxu0
    %v360 = vadd.f32 %v340, %v359
    %361 = vdwg.mxu0
    %v362 = vmul.f32 %v360, 0.5
    %v363 = vtanh.pop %v362
    %v364 = vmul.f32 %v363, 0.5
    %v365 = vadd.f32 %v364, 0.5
    %v366 = vld [vmem:[#allocation7] sm:$0xff]
    %v367 = vld [vmem:[#allocation7 + $0x8] sm:$0xff]
    %v368 = vld [vmem:[#allocation7 + $0x10] sm:$0xff]
    %v369 = vld [vmem:[#allocation7 + $0x18] sm:$0xff]
    %v370 = vld [vmem:[#allocation7 + $0x20] sm:$0xff]
    %v371 = vld [vmem:[#allocation7 + $0x28] sm:$0xff]
    %v372 = vld [vmem:[#allocation7 + $0x30] sm:$0xff]
    %v373 = vld [vmem:[#allocation7 + $0x38] sm:$0xff]
    %v374 = vld [vmem:[#allocation7 + $0x40] sm:$0xff]
    %v375 = vld [vmem:[#allocation7 + $0x48] sm:$0xff]
    %v376 = vld [vmem:[#allocation7 + $0x50] sm:$0xff]
    %v377 = vld [vmem:[#allocation7 + $0x58] sm:$0xff]
    %v378 = vld [vmem:[#allocation7 + $0x60] sm:$0xff]
    %v379 = vld [vmem:[#allocation7 + $0x68] sm:$0xff]
    %v380 = vld [vmem:[#allocation7 + $0x70] sm:$0xff]
    %v381 = vld [vmem:[#allocation7 + $0x78] sm:$0xff]
    %v382 = vld [vmem:[%s4] sm:$0x1]
    %v384 = vperm.slane %v382, 0
    %386 = vmatpush.msra.mxu0 %v381
    %387 = vmatpush.msra.mxu0 %v380
    %388 = vmatpush.msra.mxu0 %v379
    %389 = vmatpush.msra.mxu0 %v378
    %390 = vmatpush.msra.mxu0 %v377
    %391 = vmatpush.msra.mxu0 %v376
    %392 = vmatpush.msra.mxu0 %v375
    %393 = vmatpush.msra.mxu0 %v374
    %394 = vmatpush.msra.mxu0 %v373
    %395 = vmatpush.msra.mxu0 %v372
    %396 = vmatpush.msra.mxu0 %v371
    %397 = vmatpush.msra.mxu0 %v370
    %398 = vmatpush.msra.mxu0 %v369
    %399 = vmatpush.msra.mxu0 %v368
    %400 = vmatpush.msra.mxu0 %v367
    %401 = vmatpush.msra.mxu0 %v366
    %402 = vmatmul.f32.gmra.mxu0 %v365
    %v403 = vpop.f32.mrf.mxu0
    %v404 = vadd.f32 %v384, %v403
    %405 = vdwg.mxu0
    %v406 = vmul.f32 %v404, 0.5
    %v407 = vtanh.pop %v406
    %v408 = vmul.f32 %v407, 0.5
    %v409 = vadd.f32 %v408, 0.5
    %v410 = vld [vmem:[#allocation8] sm:$0xff]
    %v411 = vld [vmem:[#allocation8 + $0x8] sm:$0xff]
    %v412 = vld [vmem:[#allocation8 + $0x10] sm:$0xff]
    %v413 = vld [vmem:[#allocation8 + $0x18] sm:$0xff]
    %v414 = vld [vmem:[#allocation8 + $0x20] sm:$0xff]
    %v415 = vld [vmem:[#allocation8 + $0x28] sm:$0xff]
    %v416 = vld [vmem:[#allocation8 + $0x30] sm:$0xff]
    %v417 = vld [vmem:[#allocation8 + $0x38] sm:$0xff]
    %v418 = vld [vmem:[#allocation8 + $0x40] sm:$0xff]
    %v419 = vld [vmem:[#allocation8 + $0x48] sm:$0xff]
    %v420 = vld [vmem:[#allocation8 + $0x50] sm:$0xff]
    %v421 = vld [vmem:[#allocation8 + $0x58] sm:$0xff]
    %v422 = vld [vmem:[#allocation8 + $0x60] sm:$0xff]
    %v423 = vld [vmem:[#allocation8 + $0x68] sm:$0xff]
    %v424 = vld [vmem:[#allocation8 + $0x70] sm:$0xff]
    %v425 = vld [vmem:[#allocation8 + $0x78] sm:$0xff]
    %v426 = vld [vmem:[%s6] sm:$0x1]
    %v428 = vperm.slane %v426, 0
    %430 = vmatpush.msra.mxu0 %v425
    %431 = vmatpush.msra.mxu0 %v424
    %432 = vmatpush.msra.mxu0 %v423
    %433 = vmatpush.msra.mxu0 %v422
    %434 = vmatpush.msra.mxu0 %v421
    %435 = vmatpush.msra.mxu0 %v420
    %436 = vmatpush.msra.mxu0 %v419
    %437 = vmatpush.msra.mxu0 %v418
    %438 = vmatpush.msra.mxu0 %v417
    %439 = vmatpush.msra.mxu0 %v416
    %440 = vmatpush.msra.mxu0 %v415
    %441 = vmatpush.msra.mxu0 %v414
    %442 = vmatpush.msra.mxu0 %v413
    %443 = vmatpush.msra.mxu0 %v412
    %444 = vmatpush.msra.mxu0 %v411
    %445 = vmatpush.msra.mxu0 %v410
    %446 = vmatmul.f32.gmra.mxu0 %v409
    %v447 = vpop.f32.mrf.mxu0
    %v448 = vadd.f32 %v428, %v447
    %449 = vdwg.mxu0
    %v450 = vmul.f32 %v448, 0.5
    %v451 = vtanh.pop %v450
    %v452 = vmul.f32 %v451, 0.5
    %v453 = vadd.f32 %v452, 0.5
    %v454 = vld [vmem:[#allocation10] sm:$0xff]
    %v455 = vld [vmem:[#allocation10 + $0x8] sm:$0xff]
    %v456 = vld [vmem:[#allocation10 + $0x10] sm:$0xff]
    %v457 = vld [vmem:[#allocation10 + $0x18] sm:$0xff]
    %v458 = vld [vmem:[#allocation10 + $0x20] sm:$0xff]
    %v459 = vld [vmem:[#allocation10 + $0x28] sm:$0xff]
    %v460 = vld [vmem:[#allocation10 + $0x30] sm:$0xff]
    %v461 = vld [vmem:[#allocation10 + $0x38] sm:$0xff]
    %v462 = vld [vmem:[#allocation10 + $0x40] sm:$0xff]
    %v463 = vld [vmem:[#allocation10 + $0x48] sm:$0xff]
    %v464 = vld [vmem:[#allocation10 + $0x50] sm:$0xff]
    %v465 = vld [vmem:[#allocation10 + $0x58] sm:$0xff]
    %v466 = vld [vmem:[#allocation10 + $0x60] sm:$0xff]
    %v467 = vld [vmem:[#allocation10 + $0x68] sm:$0xff]
    %v468 = vld [vmem:[#allocation10 + $0x70] sm:$0xff]
    %v469 = vld [vmem:[#allocation10 + $0x78] sm:$0xff]
    %v470 = vld [vmem:[%s8] sm:$0x1]
    %v472 = vperm.slane %v470, 0
    %474 = vmatpush.msra.mxu0 %v469
    %475 = vmatpush.msra.mxu0 %v468
    %476 = vmatpush.msra.mxu0 %v467
    %477 = vmatpush.msra.mxu0 %v466
    %478 = vmatpush.msra.mxu0 %v465
    %479 = vmatpush.msra.mxu0 %v464
    %480 = vmatpush.msra.mxu0 %v463
    %481 = vmatpush.msra.mxu0 %v462
    %482 = vmatpush.msra.mxu0 %v461
    %483 = vmatpush.msra.mxu0 %v460
    %484 = vmatpush.msra.mxu0 %v459
    %485 = vmatpush.msra.mxu0 %v458
    %486 = vmatpush.msra.mxu0 %v457
    %487 = vmatpush.msra.mxu0 %v456
    %488 = vmatpush.msra.mxu0 %v455
    %489 = vmatpush.msra.mxu0 %v454
    %490 = vmatmul.f32.gmra.mxu0 %v453
    %v491 = vpop.f32.mrf.mxu0
    %v492 = vadd.f32 %v472, %v491
    %493 = vdwg.mxu0
    %494 = vst [vmem:[#allocation11] sm:$0xff] %v492
    // Predicated region
    $region58: #{tpu_custom_call.1} parent=1 // pred_check
      _
    $region59: #{tpu_custom_call.1} parent=1 // pred_check_branch
      %496 = sbr.rel (0) target = $region61
    $region60: #{tpu_custom_call.1} parent=1 // pred_region
      %498 = vsyncadd [#allocation4], 0
      %s500 = sshll.u32 [#allocation11], 4
      %s501 = int_to_ptr.vmem [resolvable:$true] %s500
      %s502 = sshll.u32 %s9, 4
      %s503 = int_to_ptr.hbm [resolvable:$true] %s502
      %505 = dma.vmem_to_hbm [thread:$0]  %s501, 128, %s503, [#allocation4]
    $region61: #{tpu_custom_call.1} parent=1 // pred_fallthru
      _
    // Predicated region
    $region62: #{tpu_custom_call.1} parent=1 // pred_check
      _
    $region63: #{tpu_custom_call.1} parent=1 // pred_check_branch
      %507 = sbr.rel (0) target = $region65
    $region64: #{tpu_custom_call.1} parent=1 // pred_region
      %509 = dma.done [#allocation4], 128
    $region65: #{tpu_custom_call.1} parent=1 // pred_fallthru
      _
    %510 = vsyncpa [#allocation3], 1
    %511 = vsyncpa [#allocation6], 1
    %512 = vsyncpa [#allocation9], 1
    %513 = vsyncpa [#allocation4], 1

</llo_original>
